<compile_context>
chip_gen: v7x
topology: tpu7x:2x2x1
jax: 0.10.0
libtpu: 0.0.40
codegen_flags: <defaults>
</compile_context>

<pallas_src>
import math
import jax
import jax.numpy as jnp
from jax import lax
from jax.experimental import pallas as pl
from jax.experimental.pallas import tpu as pltpu


def lstm_kernel(xp_ref, a0_ref, c0_ref, wa_ref,
                af_ref, an_ref, cn_ref,
                a_st, c_st):
    """One grid step = one chunk of T timesteps.

    xp_ref : (T, B, 4*O)        precomputed x @ Wx + b (gate cols pre-scaled)
    a0_ref : (B, O)             initial hidden state
    c0_ref : (B, O)             initial cell state
    wa_ref : (O, 4*O)           fused recurrent weights [cand | u | f | o],
                                gate cols pre-scaled by 0.5 (f32 or bf16)
    af_ref : (T//PACK, B, PACK*O)  lane-packed hidden-state outputs
    an_ref : (B, O)             final hidden state
    cn_ref : (B, O)             final cell state
    a_st, c_st : (B, O)         f32 VMEM scratch carrying state across chunks
    """
    s = pl.program_id(0)
    T = xp_ref.shape[0]                 # static (block shape)
    O = a0_ref.shape[1]
    PACK = af_ref.shape[2] // O         # timesteps packed per lane-dense row

    @pl.when(s == 0)
    def _():
        a_st[...] = a0_ref[...].astype(jnp.float32)
        c_st[...] = c0_ref[...].astype(jnp.float32)

    wa = wa_ref[...]                    # resident for the whole chunk
    a = a_st[...]
    c = c_st[...]

    # Static Python loop: T is a compile-time constant, which keeps the
    # lane-packed output offsets static.  (For large t_chunk, switch to
    # lax.fori_loop with a swept unroll factor to bound live ranges.)
    pack_buf = []
    for t in range(T):
        # Single lane-dense recurrent matmul: (B, O) @ (O, 4*O).
        pre = jnp.dot(a.astype(wa.dtype), wa,
                      preferred_element_type=jnp.float32) + xp_ref[t]
        th = jnp.tanh(pre)              # ONE EUP pass over all 4*O lanes
        g = 0.5 * th + 0.5              # sigmoid(z) = 0.5*tanh(z/2) + 0.5
        cand = th[:, 0:O]
        g_u = g[:, O:2 * O]
        g_f = g[:, 2 * O:3 * O]
        g_o = g[:, 3 * O:4 * O]
        c = g_u * cand + g_f * c
        a = g_o * jnp.tanh(c)
        pack_buf.append(a)
        if len(pack_buf) == PACK:       # one full-width (B, PACK*O) store
            af_ref[t // PACK] = jnp.concatenate(
                pack_buf, axis=-1).astype(af_ref.dtype)
            pack_buf = []

    a_st[...] = a
    c_st[...] = c
    # Written every chunk (cheap) so the final flush always has the last value.
    an_ref[...] = a.astype(an_ref.dtype)
    cn_ref[...] = c.astype(cn_ref.dtype)


def prepare_params(params, out_size, mxu_bf16=False):
    """One-time weight prep, hoisted out of the jitted forward.

    Fuses the 4 gates along the output axis (order [cand, u, f, o]) and
    pre-scales the u/f/o columns by 0.5 so the kernel only needs tanh.
    """
    O = out_size
    ws = (params['w_c'], params['w_u'], params['w_f'], params['w_o'])
    bs = (params['b_c'], params['b_u'], params['b_f'], params['b_o'])
    # Each PyTorch weight is (O, O+E): cols [:O] multiply a_prev (concat puts
    # a first), cols [O:] multiply x.  Pre-transpose so the kernel does
    # (B, O) @ (O, 4*O) and the wrapper does (..., E) @ (E, 4*O).
    wa = jnp.concatenate([jnp.transpose(w[:, :O]) for w in ws], axis=1)  # (O,4O)
    wx = jnp.concatenate([jnp.transpose(w[:, O:]) for w in ws], axis=1)  # (E,4O)
    b = jnp.concatenate(bs, axis=1)                                      # (1,4O)
    scale = jnp.concatenate([jnp.ones((1, O), jnp.float32),
                             jnp.full((1, 3 * O), 0.5, jnp.float32)], axis=1)
    wa = wa * scale
    wx = wx * scale
    b = b * scale
    if mxu_bf16:
        wa = wa.astype(jnp.bfloat16)    # MXU operands only; state stays f32
    return {'wa': wa, 'wx': wx, 'b': b}


def lstm_single_forward(x, a0, c0, prep, t_chunk=None):
    """x: (B, S, E); a0, c0: (B, O). Returns (a_f (B,S,O), a_last, c_last)."""
    B, S, E = x.shape
    O = a0.shape[1]
    wa, wx, b = prep['wa'], prep['wx'], prep['b']

    # Hoist the input projection out of the recurrence: no sequential
    # dependence, so it is one big XLA matmul for all timesteps at once.
    # Layout (S, B, 4*O) so the kernel indexes time on the leading axis.
    xp = jnp.einsum('bse,eg->sbg', x, wx,
                    preferred_element_type=jnp.float32) + b              # (S,B,4O)

    if t_chunk is None:
        t_chunk = S                      # whole sequence in one kernel step
        # NOTE: at scale, re-derive t_chunk against VMEM (v7x has 64 MiB
        # physical / 32 MiB scoped default vs 128 MiB on v5e/v6e).
    assert S % t_chunk == 0, "t_chunk must divide the sequence length"
    n_chunks = S // t_chunk

    # Pack PACK timesteps along the lane axis so a_f stores are lane-dense.
    PACK = 4 if t_chunk % 4 == 0 else (2 if t_chunk % 2 == 0 else 1)

    grid_spec = pltpu.PrefetchScalarGridSpec(
        num_scalar_prefetch=0,
        grid=(n_chunks,),
        in_specs=[
            pl.BlockSpec((t_chunk, B, 4 * O), lambda s: (s, 0, 0)),      # xp
            pl.BlockSpec((B, O), lambda s: (0, 0)),                      # a0
            pl.BlockSpec((B, O), lambda s: (0, 0)),                      # c0
            pl.BlockSpec((O, 4 * O), lambda s: (0, 0)),                  # wa
        ],
        out_specs=[
            pl.BlockSpec((t_chunk // PACK, B, PACK * O),
                         lambda s: (s, 0, 0)),                           # a_f
            pl.BlockSpec((B, O), lambda s: (0, 0)),                      # a_last
            pl.BlockSpec((B, O), lambda s: (0, 0)),                      # c_last
        ],
        scratch_shapes=[
            pltpu.VMEM((B, O), jnp.float32),                             # a state
            pltpu.VMEM((B, O), jnp.float32),                             # c state
        ],
    )

    af_packed, a_last, c_last = pl.pallas_call(
        lstm_kernel,
        out_shape=(
            jax.ShapeDtypeStruct((S // PACK, B, PACK * O), x.dtype),
            jax.ShapeDtypeStruct((B, O), x.dtype),
            jax.ShapeDtypeStruct((B, O), x.dtype),
        ),
        grid_spec=grid_spec,
        compiler_params=pltpu.CompilerParams(
            dimension_semantics=("arbitrary",)),   # recurrent over time chunks
    )(xp, a0, c0, wa)

    # Unpack lane-packed output back to (B, S, O).
    a_f = (af_packed.reshape(S // PACK, B, PACK, O)
           .transpose(1, 0, 2, 3).reshape(B, S, O))
    return a_f, a_last, c_last


def xavier_uniform(key, shape):
    fan_out, fan_in = shape
    bound = math.sqrt(6.0 / (fan_in + fan_out))
    return jax.random.uniform(key, shape, jnp.float32, -bound, bound)


def make_params(key, emb, out):
    cat = emb + out
    ks = jax.random.split(key, 8)
    return {
        'w_c': xavier_uniform(ks[0], (out, cat)),
        'w_u': xavier_uniform(ks[1], (out, cat)),
        'w_f': xavier_uniform(ks[2], (out, cat)),
        'w_o': xavier_uniform(ks[3], (out, cat)),
        'b_c': xavier_uniform(ks[4], (1, out)),
        'b_u': xavier_uniform(ks[5], (1, out)),
        'b_f': xavier_uniform(ks[6], (1, out)),
        'b_o': xavier_uniform(ks[7], (1, out)),
    }


def lstm_single_reference(x, a0, c0, p):
    """Pure-JAX reference matching the PyTorch forward exactly."""
    B, S, E = x.shape
    a, c = a0, c0
    outs = []
    for t in range(S):
        xa = jnp.concatenate([a, x[:, t, :]], axis=1)          # (B, O+E)
        cand = jnp.tanh(xa @ p['w_c'].T + p['b_c'])
        g_u = jax.nn.sigmoid(xa @ p['w_u'].T + p['b_u'])
        g_f = jax.nn.sigmoid(xa @ p['w_f'].T + p['b_f'])
        g_o = jax.nn.sigmoid(xa @ p['w_o'].T + p['b_o'])
        c = g_u * cand + g_f * c
        a = g_o * jnp.tanh(c)
        outs.append(a)
    return jnp.stack(outs, axis=1), a, c


if __name__ == "__main__":
    B, S, E, O = 8, 8, 32, 32  # batch, seq, embedding_size, out_size

    key = jax.random.PRNGKey(0)
    k_p, k_x, k_a, k_c = jax.random.split(key, 4)

    params = make_params(k_p, E, O)
    x = jax.random.normal(k_x, (B, S, E), jnp.float32)
    a0 = jax.random.normal(k_a, (B, O), jnp.float32)
    c0 = jax.random.normal(k_c, (B, O), jnp.float32)

    a_f_ref, a_ref, c_ref = lstm_single_reference(x, a0, c0, params)

    fwd = jax.jit(lstm_single_forward)

    # --- f32 MXU path: strict correctness check -----------------------------
    prep32 = prepare_params(params, O, mxu_bf16=False)
    a_f, a_last, c_last = fwd(x, a0, c0, prep32)
    jax.block_until_ready((a_f, a_last, c_last))
    assert a_f.shape == (B, S, O) and a_last.shape == (B, O) and c_last.shape == (B, O)
    assert jnp.allclose(a_f, a_f_ref, atol=1e-4, rtol=1e-4)
    assert jnp.allclose(a_last, a_ref, atol=1e-4, rtol=1e-4)
    assert jnp.allclose(c_last, c_ref, atol=1e-4, rtol=1e-4)

    # --- bf16 MXU path (recurrent weights/operands only): loose check -------
    prep16 = prepare_params(params, O, mxu_bf16=True)
    a_f16, a_last16, c_last16 = fwd(x, a0, c0, prep16)
    jax.block_until_ready((a_f16, a_last16, c_last16))
    assert jnp.allclose(a_f16, a_f_ref, atol=5e-2, rtol=5e-2)
    assert jnp.allclose(a_last16, a_ref, atol=5e-2, rtol=5e-2)
    assert jnp.allclose(c_last16, c_ref, atol=5e-2, rtol=5e-2)

    print("KERNEL_OK")
</pallas_src>

<mosaic_0001>
module attributes {stable_mosaic.version = 11 : i64} {
  func.func @lstm_kernel(%arg0: i32, %arg1: memref<8x8x128xf32, #tpu.memory_space<vmem>>, %arg2: memref<8x32xf32, #tpu.memory_space<vmem>>, %arg3: memref<8x32xf32, #tpu.memory_space<vmem>>, %arg4: memref<32x128xf32, #tpu.memory_space<vmem>>, %arg5: memref<2x8x128xf32, #tpu.memory_space<vmem>>, %arg6: memref<8x32xf32, #tpu.memory_space<vmem>>, %arg7: memref<8x32xf32, #tpu.memory_space<vmem>>, %arg8: memref<8x32xf32, #tpu.memory_space<vmem>>, %arg9: memref<8x32xf32, #tpu.memory_space<vmem>>) attributes {dimension_semantics = [#tpu.dimension_semantics<arbitrary>], iteration_bounds = array<i64: 1>, scalar_prefetch = 0 : i64, scratch_operands = 2 : i64, tpu.core_type = #tpu.core_type<tc>, window_params = [{transform_indices = @transform_0, window_bounds = array<i64: 8, 8, 128>}, {pipeline_mode = #tpu.pipeline_mode<synchronous>, transform_indices = @transform_1, window_bounds = array<i64: 8, 32>}, {pipeline_mode = #tpu.pipeline_mode<synchronous>, transform_indices = @transform_2, window_bounds = array<i64: 8, 32>}, {pipeline_mode = #tpu.pipeline_mode<synchronous>, transform_indices = @transform_3, window_bounds = array<i64: 32, 128>}, {transform_indices = @transform_4, window_bounds = array<i64: 2, 8, 128>}, {pipeline_mode = #tpu.pipeline_mode<synchronous>, transform_indices = @transform_5, window_bounds = array<i64: 8, 32>}, {pipeline_mode = #tpu.pipeline_mode<synchronous>, transform_indices = @transform_6, window_bounds = array<i64: 8, 32>}]} {
    %c0_i32 = arith.constant 0 : i32
    %0 = arith.cmpi eq, %arg0, %c0_i32 : i32
    %1 = arith.extui %0 : i1 to i32
    %c0_i32_0 = arith.constant 0 : i32
    %2 = arith.cmpi ne, %1, %c0_i32_0 : i32
    scf.if %2 {
      %c0_60 = arith.constant 0 : index
      %c0_61 = arith.constant 0 : index
      %162 = vector.load %arg2[%c0_60, %c0_61] : memref<8x32xf32, #tpu.memory_space<vmem>>, vector<8x32xf32>
      %c0_62 = arith.constant 0 : index
      %c0_63 = arith.constant 0 : index
      %163 = vector.load %arg8[%c0_62, %c0_63] : memref<8x32xf32, #tpu.memory_space<vmem>>, vector<8x32xf32>
      tpu.vector_store %arg8[%c0_62, %c0_63], %162 {strides = array<i32>} : memref<8x32xf32, #tpu.memory_space<vmem>>, vector<8x32xf32>,
      %c0_64 = arith.constant 0 : index
      %c0_65 = arith.constant 0 : index
      %164 = vector.load %arg3[%c0_64, %c0_65] : memref<8x32xf32, #tpu.memory_space<vmem>>, vector<8x32xf32>
      %c0_66 = arith.constant 0 : index
      %c0_67 = arith.constant 0 : index
      %165 = vector.load %arg9[%c0_66, %c0_67] : memref<8x32xf32, #tpu.memory_space<vmem>>, vector<8x32xf32>
      tpu.vector_store %arg9[%c0_66, %c0_67], %164 {strides = array<i32>} : memref<8x32xf32, #tpu.memory_space<vmem>>, vector<8x32xf32>,
    } else {
    }
    %c0 = arith.constant 0 : index
    %c0_1 = arith.constant 0 : index
    %3 = vector.load %arg4[%c0, %c0_1] : memref<32x128xf32, #tpu.memory_space<vmem>>, vector<32x128xf32>
    %c0_2 = arith.constant 0 : index
    %c0_3 = arith.constant 0 : index
    %4 = vector.load %arg8[%c0_2, %c0_3] : memref<8x32xf32, #tpu.memory_space<vmem>>, vector<8x32xf32>
    %c0_4 = arith.constant 0 : index
    %c0_5 = arith.constant 0 : index
    %5 = vector.load %arg9[%c0_4, %c0_5] : memref<8x32xf32, #tpu.memory_space<vmem>>, vector<8x32xf32>
    %cst = arith.constant dense<0.000000e+00> : vector<8x128xf32>
    %6 = tpu.matmul %4, %3, %cst {dimension_numbers = #tpu.dot_dimension_numbers<[1], [0], [0], [1], [0, 0, 1, 1], [], []>} : vector<8x32xf32>, vector<32x128xf32>, vector<8x128xf32> -> vector<8x128xf32>
    %c0_6 = arith.constant 0 : index
    %c0_7 = arith.constant 0 : index
    %c0_8 = arith.constant 0 : index
    %7 = vector.load %arg1[%c0_6, %c0_7, %c0_8] : memref<8x8x128xf32, #tpu.memory_space<vmem>>, vector<1x8x128xf32>
    %8 = vector.shape_cast %7 : vector<1x8x128xf32> to vector<8x128xf32>
    %9 = arith.addf %6, %8 : vector<8x128xf32>
    %10 = math.tanh %9 : vector<8x128xf32>
    %cst_9 = arith.constant 5.000000e-01 : f32
    %11 = vector.broadcast %cst_9 : f32 to vector<8x128xf32>
    %12 = arith.mulf %11, %10 : vector<8x128xf32>
    %cst_10 = arith.constant 5.000000e-01 : f32
    %13 = vector.broadcast %cst_10 : f32 to vector<8x128xf32>
    %14 = arith.addf %12, %13 : vector<8x128xf32>
    %15 = vector.extract_strided_slice %10 {offsets = [0, 0], sizes = [8, 32], strides = [1, 1]} : vector<8x128xf32> to vector<8x32xf32>
    %16 = vector.extract_strided_slice %14 {offsets = [0, 32], sizes = [8, 32], strides = [1, 1]} : vector<8x128xf32> to vector<8x32xf32>
    %17 = vector.extract_strided_slice %14 {offsets = [0, 64], sizes = [8, 32], strides = [1, 1]} : vector<8x128xf32> to vector<8x32xf32>
    %18 = vector.extract_strided_slice %14 {offsets = [0, 96], sizes = [8, 32], strides = [1, 1]} : vector<8x128xf32> to vector<8x32xf32>
    %19 = arith.mulf %16, %15 : vector<8x32xf32>
    %20 = arith.mulf %17, %5 : vector<8x32xf32>
    %21 = arith.addf %19, %20 : vector<8x32xf32>
    %22 = math.tanh %21 : vector<8x32xf32>
    %23 = arith.mulf %18, %22 : vector<8x32xf32>
    %cst_11 = arith.constant dense<0.000000e+00> : vector<8x128xf32>
    %24 = tpu.matmul %23, %3, %cst_11 {dimension_numbers = #tpu.dot_dimension_numbers<[1], [0], [0], [1], [0, 0, 1, 1], [], []>} : vector<8x32xf32>, vector<32x128xf32>, vector<8x128xf32> -> vector<8x128xf32>
    %c1 = arith.constant 1 : index
    %c0_12 = arith.constant 0 : index
    %c0_13 = arith.constant 0 : index
    %25 = vector.load %arg1[%c1, %c0_12, %c0_13] : memref<8x8x128xf32, #tpu.memory_space<vmem>>, vector<1x8x128xf32>
    %26 = vector.shape_cast %25 : vector<1x8x128xf32> to vector<8x128xf32>
    %27 = arith.addf %24, %26 : vector<8x128xf32>
    %28 = math.tanh %27 : vector<8x128xf32>
    %cst_14 = arith.constant 5.000000e-01 : f32
    %29 = vector.broadcast %cst_14 : f32 to vector<8x128xf32>
    %30 = arith.mulf %29, %28 : vector<8x128xf32>
    %cst_15 = arith.constant 5.000000e-01 : f32
    %31 = vector.broadcast %cst_15 : f32 to vector<8x128xf32>
    %32 = arith.addf %30, %31 : vector<8x128xf32>
    %33 = vector.extract_strided_slice %28 {offsets = [0, 0], sizes = [8, 32], strides = [1, 1]} : vector<8x128xf32> to vector<8x32xf32>
    %34 = vector.extract_strided_slice %32 {offsets = [0, 32], sizes = [8, 32], strides = [1, 1]} : vector<8x128xf32> to vector<8x32xf32>
    %35 = vector.extract_strided_slice %32 {offsets = [0, 64], sizes = [8, 32], strides = [1, 1]} : vector<8x128xf32> to vector<8x32xf32>
    %36 = vector.extract_strided_slice %32 {offsets = [0, 96], sizes = [8, 32], strides = [1, 1]} : vector<8x128xf32> to vector<8x32xf32>
    %37 = arith.mulf %34, %33 : vector<8x32xf32>
    %38 = arith.mulf %35, %21 : vector<8x32xf32>
    %39 = arith.addf %37, %38 : vector<8x32xf32>
    %40 = math.tanh %39 : vector<8x32xf32>
    %41 = arith.mulf %36, %40 : vector<8x32xf32>
    %cst_16 = arith.constant dense<0.000000e+00> : vector<8x128xf32>
    %42 = tpu.matmul %41, %3, %cst_16 {dimension_numbers = #tpu.dot_dimension_numbers<[1], [0], [0], [1], [0, 0, 1, 1], [], []>} : vector<8x32xf32>, vector<32x128xf32>, vector<8x128xf32> -> vector<8x128xf32>
    %c2 = arith.constant 2 : index
    %c0_17 = arith.constant 0 : index
    %c0_18 = arith.constant 0 : index
    %43 = vector.load %arg1[%c2, %c0_17, %c0_18] : memref<8x8x128xf32, #tpu.memory_space<vmem>>, vector<1x8x128xf32>
    %44 = vector.shape_cast %43 : vector<1x8x128xf32> to vector<8x128xf32>
    %45 = arith.addf %42, %44 : vector<8x128xf32>
    %46 = math.tanh %45 : vector<8x128xf32>
    %cst_19 = arith.constant 5.000000e-01 : f32
    %47 = vector.broadcast %cst_19 : f32 to vector<8x128xf32>
    %48 = arith.mulf %47, %46 : vector<8x128xf32>
    %cst_20 = arith.constant 5.000000e-01 : f32
    %49 = vector.broadcast %cst_20 : f32 to vector<8x128xf32>
    %50 = arith.addf %48, %49 : vector<8x128xf32>
    %51 = vector.extract_strided_slice %46 {offsets = [0, 0], sizes = [8, 32], strides = [1, 1]} : vector<8x128xf32> to vector<8x32xf32>
    %52 = vector.extract_strided_slice %50 {offsets = [0, 32], sizes = [8, 32], strides = [1, 1]} : vector<8x128xf32> to vector<8x32xf32>
    %53 = vector.extract_strided_slice %50 {offsets = [0, 64], sizes = [8, 32], strides = [1, 1]} : vector<8x128xf32> to vector<8x32xf32>
    %54 = vector.extract_strided_slice %50 {offsets = [0, 96], sizes = [8, 32], strides = [1, 1]} : vector<8x128xf32> to vector<8x32xf32>
    %55 = arith.mulf %52, %51 : vector<8x32xf32>
    %56 = arith.mulf %53, %39 : vector<8x32xf32>
    %57 = arith.addf %55, %56 : vector<8x32xf32>
    %58 = math.tanh %57 : vector<8x32xf32>
    %59 = arith.mulf %54, %58 : vector<8x32xf32>
    %cst_21 = arith.constant dense<0.000000e+00> : vector<8x128xf32>
    %60 = tpu.matmul %59, %3, %cst_21 {dimension_numbers = #tpu.dot_dimension_numbers<[1], [0], [0], [1], [0, 0, 1, 1], [], []>} : vector<8x32xf32>, vector<32x128xf32>, vector<8x128xf32> -> vector<8x128xf32>
    %c3 = arith.constant 3 : index
    %c0_22 = arith.constant 0 : index
    %c0_23 = arith.constant 0 : index
    %61 = vector.load %arg1[%c3, %c0_22, %c0_23] : memref<8x8x128xf32, #tpu.memory_space<vmem>>, vector<1x8x128xf32>
    %62 = vector.shape_cast %61 : vector<1x8x128xf32> to vector<8x128xf32>
    %63 = arith.addf %60, %62 : vector<8x128xf32>
    %64 = math.tanh %63 : vector<8x128xf32>
    %cst_24 = arith.constant 5.000000e-01 : f32
    %65 = vector.broadcast %cst_24 : f32 to vector<8x128xf32>
    %66 = arith.mulf %65, %64 : vector<8x128xf32>
    %cst_25 = arith.constant 5.000000e-01 : f32
    %67 = vector.broadcast %cst_25 : f32 to vector<8x128xf32>
    %68 = arith.addf %66, %67 : vector<8x128xf32>
    %69 = vector.extract_strided_slice %64 {offsets = [0, 0], sizes = [8, 32], strides = [1, 1]} : vector<8x128xf32> to vector<8x32xf32>
    %70 = vector.extract_strided_slice %68 {offsets = [0, 32], sizes = [8, 32], strides = [1, 1]} : vector<8x128xf32> to vector<8x32xf32>
    %71 = vector.extract_strided_slice %68 {offsets = [0, 64], sizes = [8, 32], strides = [1, 1]} : vector<8x128xf32> to vector<8x32xf32>
    %72 = vector.extract_strided_slice %68 {offsets = [0, 96], sizes = [8, 32], strides = [1, 1]} : vector<8x128xf32> to vector<8x32xf32>
    %73 = arith.mulf %70, %69 : vector<8x32xf32>
    %74 = arith.mulf %71, %57 : vector<8x32xf32>
    %75 = arith.addf %73, %74 : vector<8x32xf32>
    %76 = math.tanh %75 : vector<8x32xf32>
    %77 = arith.mulf %72, %76 : vector<8x32xf32>
    %78 = tpu.concatenate %23, %41, %59, %77 in 1 : vector<8x32xf32>, vector<8x32xf32>, vector<8x32xf32>, vector<8x32xf32> -> vector<8x128xf32>
    %c0_26 = arith.constant 0 : index
    %c0_27 = arith.constant 0 : index
    %c0_28 = arith.constant 0 : index
    %79 = vector.load %arg5[%c0_26, %c0_27, %c0_28] : memref<2x8x128xf32, #tpu.memory_space<vmem>>, vector<1x8x128xf32>
    %80 = vector.shape_cast %79 : vector<1x8x128xf32> to vector<8x128xf32>
    %81 = vector.shape_cast %78 : vector<8x128xf32> to vector<1x8x128xf32>
    tpu.vector_store %arg5[%c0_26, %c0_27, %c0_28], %81 {strides = array<i32>} : memref<2x8x128xf32, #tpu.memory_space<vmem>>, vector<1x8x128xf32>,
    %cst_29 = arith.constant dense<0.000000e+00> : vector<8x128xf32>
    %82 = tpu.matmul %77, %3, %cst_29 {dimension_numbers = #tpu.dot_dimension_numbers<[1], [0], [0], [1], [0, 0, 1, 1], [], []>} : vector<8x32xf32>, vector<32x128xf32>, vector<8x128xf32> -> vector<8x128xf32>
    %c4 = arith.constant 4 : index
    %c0_30 = arith.constant 0 : index
    %c0_31 = arith.constant 0 : index
    %83 = vector.load %arg1[%c4, %c0_30, %c0_31] : memref<8x8x128xf32, #tpu.memory_space<vmem>>, vector<1x8x128xf32>
    %84 = vector.shape_cast %83 : vector<1x8x128xf32> to vector<8x128xf32>
    %85 = arith.addf %82, %84 : vector<8x128xf32>
    %86 = math.tanh %85 : vector<8x128xf32>
    %cst_32 = arith.constant 5.000000e-01 : f32
    %87 = vector.broadcast %cst_32 : f32 to vector<8x128xf32>
    %88 = arith.mulf %87, %86 : vector<8x128xf32>
    %cst_33 = arith.constant 5.000000e-01 : f32
    %89 = vector.broadcast %cst_33 : f32 to vector<8x128xf32>
    %90 = arith.addf %88, %89 : vector<8x128xf32>
    %91 = vector.extract_strided_slice %86 {offsets = [0, 0], sizes = [8, 32], strides = [1, 1]} : vector<8x128xf32> to vector<8x32xf32>
    %92 = vector.extract_strided_slice %90 {offsets = [0, 32], sizes = [8, 32], strides = [1, 1]} : vector<8x128xf32> to vector<8x32xf32>
    %93 = vector.extract_strided_slice %90 {offsets = [0, 64], sizes = [8, 32], strides = [1, 1]} : vector<8x128xf32> to vector<8x32xf32>
    %94 = vector.extract_strided_slice %90 {offsets = [0, 96], sizes = [8, 32], strides = [1, 1]} : vector<8x128xf32> to vector<8x32xf32>
    %95 = arith.mulf %92, %91 : vector<8x32xf32>
    %96 = arith.mulf %93, %75 : vector<8x32xf32>
    %97 = arith.addf %95, %96 : vector<8x32xf32>
    %98 = math.tanh %97 : vector<8x32xf32>
    %99 = arith.mulf %94, %98 : vector<8x32xf32>
    %cst_34 = arith.constant dense<0.000000e+00> : vector<8x128xf32>
    %100 = tpu.matmul %99, %3, %cst_34 {dimension_numbers = #tpu.dot_dimension_numbers<[1], [0], [0], [1], [0, 0, 1, 1], [], []>} : vector<8x32xf32>, vector<32x128xf32>, vector<8x128xf32> -> vector<8x128xf32>
    %c5 = arith.constant 5 : index
    %c0_35 = arith.constant 0 : index
    %c0_36 = arith.constant 0 : index
    %101 = vector.load %arg1[%c5, %c0_35, %c0_36] : memref<8x8x128xf32, #tpu.memory_space<vmem>>, vector<1x8x128xf32>
    %102 = vector.shape_cast %101 : vector<1x8x128xf32> to vector<8x128xf32>
    %103 = arith.addf %100, %102 : vector<8x128xf32>
    %104 = math.tanh %103 : vector<8x128xf32>
    %cst_37 = arith.constant 5.000000e-01 : f32
    %105 = vector.broadcast %cst_37 : f32 to vector<8x128xf32>
    %106 = arith.mulf %105, %104 : vector<8x128xf32>
    %cst_38 = arith.constant 5.000000e-01 : f32
    %107 = vector.broadcast %cst_38 : f32 to vector<8x128xf32>
    %108 = arith.addf %106, %107 : vector<8x128xf32>
    %109 = vector.extract_strided_slice %104 {offsets = [0, 0], sizes = [8, 32], strides = [1, 1]} : vector<8x128xf32> to vector<8x32xf32>
    %110 = vector.extract_strided_slice %108 {offsets = [0, 32], sizes = [8, 32], strides = [1, 1]} : vector<8x128xf32> to vector<8x32xf32>
    %111 = vector.extract_strided_slice %108 {offsets = [0, 64], sizes = [8, 32], strides = [1, 1]} : vector<8x128xf32> to vector<8x32xf32>
    %112 = vector.extract_strided_slice %108 {offsets = [0, 96], sizes = [8, 32], strides = [1, 1]} : vector<8x128xf32> to vector<8x32xf32>
    %113 = arith.mulf %110, %109 : vector<8x32xf32>
    %114 = arith.mulf %111, %97 : vector<8x32xf32>
    %115 = arith.addf %113, %114 : vector<8x32xf32>
    %116 = math.tanh %115 : vector<8x32xf32>
    %117 = arith.mulf %112, %116 : vector<8x32xf32>
    %cst_39 = arith.constant dense<0.000000e+00> : vector<8x128xf32>
    %118 = tpu.matmul %117, %3, %cst_39 {dimension_numbers = #tpu.dot_dimension_numbers<[1], [0], [0], [1], [0, 0, 1, 1], [], []>} : vector<8x32xf32>, vector<32x128xf32>, vector<8x128xf32> -> vector<8x128xf32>
    %c6 = arith.constant 6 : index
    %c0_40 = arith.constant 0 : index
    %c0_41 = arith.constant 0 : index
    %119 = vector.load %arg1[%c6, %c0_40, %c0_41] : memref<8x8x128xf32, #tpu.memory_space<vmem>>, vector<1x8x128xf32>
    %120 = vector.shape_cast %119 : vector<1x8x128xf32> to vector<8x128xf32>
    %121 = arith.addf %118, %120 : vector<8x128xf32>
    %122 = math.tanh %121 : vector<8x128xf32>
    %cst_42 = arith.constant 5.000000e-01 : f32
    %123 = vector.broadcast %cst_42 : f32 to vector<8x128xf32>
    %124 = arith.mulf %123, %122 : vector<8x128xf32>
    %cst_43 = arith.constant 5.000000e-01 : f32
    %125 = vector.broadcast %cst_43 : f32 to vector<8x128xf32>
    %126 = arith.addf %124, %125 : vector<8x128xf32>
    %127 = vector.extract_strided_slice %122 {offsets = [0, 0], sizes = [8, 32], strides = [1, 1]} : vector<8x128xf32> to vector<8x32xf32>
    %128 = vector.extract_strided_slice %126 {offsets = [0, 32], sizes = [8, 32], strides = [1, 1]} : vector<8x128xf32> to vector<8x32xf32>
    %129 = vector.extract_strided_slice %126 {offsets = [0, 64], sizes = [8, 32], strides = [1, 1]} : vector<8x128xf32> to vector<8x32xf32>
    %130 = vector.extract_strided_slice %126 {offsets = [0, 96], sizes = [8, 32], strides = [1, 1]} : vector<8x128xf32> to vector<8x32xf32>
    %131 = arith.mulf %128, %127 : vector<8x32xf32>
    %132 = arith.mulf %129, %115 : vector<8x32xf32>
    %133 = arith.addf %131, %132 : vector<8x32xf32>
    %134 = math.tanh %133 : vector<8x32xf32>
    %135 = arith.mulf %130, %134 : vector<8x32xf32>
    %cst_44 = arith.constant dense<0.000000e+00> : vector<8x128xf32>
    %136 = tpu.matmul %135, %3, %cst_44 {dimension_numbers = #tpu.dot_dimension_numbers<[1], [0], [0], [1], [0, 0, 1, 1], [], []>} : vector<8x32xf32>, vector<32x128xf32>, vector<8x128xf32> -> vector<8x128xf32>
    %c7 = arith.constant 7 : index
    %c0_45 = arith.constant 0 : index
    %c0_46 = arith.constant 0 : index
    %137 = vector.load %arg1[%c7, %c0_45, %c0_46] : memref<8x8x128xf32, #tpu.memory_space<vmem>>, vector<1x8x128xf32>
    %138 = vector.shape_cast %137 : vector<1x8x128xf32> to vector<8x128xf32>
    %139 = arith.addf %136, %138 : vector<8x128xf32>
    %140 = math.tanh %139 : vector<8x128xf32>
    %cst_47 = arith.constant 5.000000e-01 : f32
    %141 = vector.broadcast %cst_47 : f32 to vector<8x128xf32>
    %142 = arith.mulf %141, %140 : vector<8x128xf32>
    %cst_48 = arith.constant 5.000000e-01 : f32
    %143 = vector.broadcast %cst_48 : f32 to vector<8x128xf32>
    %144 = arith.addf %142, %143 : vector<8x128xf32>
    %145 = vector.extract_strided_slice %140 {offsets = [0, 0], sizes = [8, 32], strides = [1, 1]} : vector<8x128xf32> to vector<8x32xf32>
    %146 = vector.extract_strided_slice %144 {offsets = [0, 32], sizes = [8, 32], strides = [1, 1]} : vector<8x128xf32> to vector<8x32xf32>
    %147 = vector.extract_strided_slice %144 {offsets = [0, 64], sizes = [8, 32], strides = [1, 1]} : vector<8x128xf32> to vector<8x32xf32>
    %148 = vector.extract_strided_slice %144 {offsets = [0, 96], sizes = [8, 32], strides = [1, 1]} : vector<8x128xf32> to vector<8x32xf32>
    %149 = arith.mulf %146, %145 : vector<8x32xf32>
    %150 = arith.mulf %147, %133 : vector<8x32xf32>
    %151 = arith.addf %149, %150 : vector<8x32xf32>
    %152 = math.tanh %151 : vector<8x32xf32>
    %153 = arith.mulf %148, %152 : vector<8x32xf32>
    %154 = tpu.concatenate %99, %117, %135, %153 in 1 : vector<8x32xf32>, vector<8x32xf32>, vector<8x32xf32>, vector<8x32xf32> -> vector<8x128xf32>
    %c1_49 = arith.constant 1 : index
    %c0_50 = arith.constant 0 : index
    %c0_51 = arith.constant 0 : index
    %155 = vector.load %arg5[%c1_49, %c0_50, %c0_51] : memref<2x8x128xf32, #tpu.memory_space<vmem>>, vector<1x8x128xf32>
    %156 = vector.shape_cast %155 : vector<1x8x128xf32> to vector<8x128xf32>
    %157 = vector.shape_cast %154 : vector<8x128xf32> to vector<1x8x128xf32>
    tpu.vector_store %arg5[%c1_49, %c0_50, %c0_51], %157 {strides = array<i32>} : memref<2x8x128xf32, #tpu.memory_space<vmem>>, vector<1x8x128xf32>,
    %c0_52 = arith.constant 0 : index
    %c0_53 = arith.constant 0 : index
    %158 = vector.load %arg8[%c0_52, %c0_53] : memref<8x32xf32, #tpu.memory_space<vmem>>, vector<8x32xf32>
    tpu.vector_store %arg8[%c0_52, %c0_53], %153 {strides = array<i32>} : memref<8x32xf32, #tpu.memory_space<vmem>>, vector<8x32xf32>,
    %c0_54 = arith.constant 0 : index
    %c0_55 = arith.constant 0 : index
    %159 = vector.load %arg9[%c0_54, %c0_55] : memref<8x32xf32, #tpu.memory_space<vmem>>, vector<8x32xf32>
    tpu.vector_store %arg9[%c0_54, %c0_55], %151 {strides = array<i32>} : memref<8x32xf32, #tpu.memory_space<vmem>>, vector<8x32xf32>,
    %c0_56 = arith.constant 0 : index
    %c0_57 = arith.constant 0 : index
    %160 = vector.load %arg6[%c0_56, %c0_57] : memref<8x32xf32, #tpu.memory_space<vmem>>, vector<8x32xf32>
    tpu.vector_store %arg6[%c0_56, %c0_57], %153 {strides = array<i32>} : memref<8x32xf32, #tpu.memory_space<vmem>>, vector<8x32xf32>,
    %c0_58 = arith.constant 0 : index
    %c0_59 = arith.constant 0 : index
    %161 = vector.load %arg7[%c0_58, %c0_59] : memref<8x32xf32, #tpu.memory_space<vmem>>, vector<8x32xf32>
    tpu.vector_store %arg7[%c0_58, %c0_59], %151 {strides = array<i32>} : memref<8x32xf32, #tpu.memory_space<vmem>>, vector<8x32xf32>,
    return
  }
  func.func @transform_0(%arg0: i32) -> (i32, i32, i32) {
    %c0_i32 = arith.constant 0 : i32
    %c0_i32_0 = arith.constant 0 : i32
    %c0_i32_1 = arith.constant 0 : i32
    return %arg0, %c0_i32, %c0_i32_0 : i32, i32, i32
  }
  func.func @transform_1(%arg0: i32) -> (i32, i32) {
    %c0_i32 = arith.constant 0 : i32
    %c0_i32_0 = arith.constant 0 : i32
    %c0_i32_1 = arith.constant 0 : i32
    return %c0_i32, %c0_i32_0 : i32, i32
  }
  func.func @transform_2(%arg0: i32) -> (i32, i32) {
    %c0_i32 = arith.constant 0 : i32
    %c0_i32_0 = arith.constant 0 : i32
    %c0_i32_1 = arith.constant 0 : i32
    return %c0_i32, %c0_i32_0 : i32, i32
  }
  func.func @transform_3(%arg0: i32) -> (i32, i32) {
    %c0_i32 = arith.constant 0 : i32
    %c0_i32_0 = arith.constant 0 : i32
    %c0_i32_1 = arith.constant 0 : i32
    return %c0_i32, %c0_i32_0 : i32, i32
  }
  func.func @transform_4(%arg0: i32) -> (i32, i32, i32) {
    %c0_i32 = arith.constant 0 : i32
    %c0_i32_0 = arith.constant 0 : i32
    %c0_i32_1 = arith.constant 0 : i32
    return %arg0, %c0_i32, %c0_i32_0 : i32, i32, i32
  }
  func.func @transform_5(%arg0: i32) -> (i32, i32) {
    %c0_i32 = arith.constant 0 : i32
    %c0_i32_0 = arith.constant 0 : i32
    %c0_i32_1 = arith.constant 0 : i32
    return %c0_i32, %c0_i32_0 : i32, i32
  }
  func.func @transform_6(%arg0: i32) -> (i32, i32) {
    %c0_i32 = arith.constant 0 : i32
    %c0_i32_0 = arith.constant 0 : i32
    %c0_i32_1 = arith.constant 0 : i32
    return %c0_i32, %c0_i32_0 : i32, i32
  }
}

</mosaic_0001>

<llo_original>
// kernel: lstm_single_forward.1
$region0: #{lstm_single_forward.1}
  #allocation0 [shape = 'u32[]', space=smem, size = 0x4, offset = 0x4, fixed_abs, tag = 'smem constant byte address 0x4 - core index']
  #allocation1 [shape = 'u32[144,128]{1,0:T(1,128)}', space=vmem, size = 0x12000, scoped, tag = 'internal scratch']
  #allocation2 [shape = 'f32[8,32]{1,0:T(8,128)}', space=vmem, size = 0x1000, scoped, tag = 'scratch operand']
  #allocation3 [shape = 'f32[8,32]{1,0:T(8,128)}', space=vmem, size = 0x1000, scoped, tag = 'scratch operand']
  %s0 = inlined_call_operand.vmem [shape: f32[8,8,128], index: 0, kind: input, shape index: {}]
  %s1 = inlined_call_operand.vmem [shape: f32[8,32], index: 1, kind: input, shape index: {}]
  %s2 = inlined_call_operand.vmem [shape: f32[8,32], index: 2, kind: input, shape index: {}]
  %s3 = inlined_call_operand.vmem [shape: f32[32,128], index: 3, kind: input, shape index: {}]
  %s4 = inlined_call_operand.vmem [shape: f32[2,8,128], index: 4, kind: output, shape index: {0}]
  %s5 = inlined_call_operand.hbm [shape: f32[8,32], index: 5, kind: output, shape index: {1}]
  %s6 = inlined_call_operand.hbm [shape: f32[8,32], index: 6, kind: output, shape index: {2}]
  %7 = xla_tuple %s4, %s5, %s6
  %s8 = sld [smem:[#allocation0]]
  $region46: #{lstm_single_forward.1} parent=0
    _
  %s10 = ssub.s32 1, %s8
  %s11 = scalar_select 0, %s10, %s8
  $region1: #{lstm_single_forward.1} parent=0
    #allocation4 [shape = 'u8[4096]{0}', space=vmem, size = 0x1000, scoped, tag = 'output window, operand 1, single buffered']
    #allocation5 [shape = 's32[1]{0}', space=sflag, size = 0x4, scoped, tag = 'scoped memory for lstm_single_forward.1']
    #allocation6 [shape = 'u8[4096]{0}', space=vmem, size = 0x1000, scoped, tag = 'output window, operand 2, single buffered']
    #allocation7 [shape = 's32[1]{0}', space=sflag, size = 0x4, scoped, tag = 'scoped memory for lstm_single_forward.1']
    %12 = vsyncpa [#allocation5], 0
    %13 = vsyncpa [#allocation7], 0
    // Predicated region
    $region2: #{lstm_single_forward.1} parent=1 // pred_check
      _
    $region3: #{lstm_single_forward.1} parent=1 // pred_check_branch
      %15 = sbr.rel (0) target = $region5
    $region4: #{lstm_single_forward.1} parent=1 // pred_region
      _
    $region5: #{lstm_single_forward.1} parent=1 // pred_fallthru
      _
    // Predicated region
    $region6: #{lstm_single_forward.1} parent=1 // pred_check
      _
    $region7: #{lstm_single_forward.1} parent=1 // pred_check_branch
      %17 = sbr.rel (0) target = $region9
    $region8: #{lstm_single_forward.1} parent=1 // pred_region
      _
    $region9: #{lstm_single_forward.1} parent=1 // pred_fallthru
      _
    // Predicated region
    $region10: #{lstm_single_forward.1} parent=1 // pred_check
      _
    $region11: #{lstm_single_forward.1} parent=1 // pred_check_branch
      %19 = sbr.rel (0) target = $region13
    $region12: #{lstm_single_forward.1} parent=1 // pred_region
      _
    $region13: #{lstm_single_forward.1} parent=1 // pred_fallthru
      _
    // Predicated region
    $region14: #{lstm_single_forward.1} parent=1 // pred_check
      _
    $region15: #{lstm_single_forward.1} parent=1 // pred_check_branch
      %21 = sbr.rel (0) target = $region17
    $region16: #{lstm_single_forward.1} parent=1 // pred_region
      _
    $region17: #{lstm_single_forward.1} parent=1 // pred_fallthru
      _
    %p22 = scmp.eq.s32.totalorder 0, 0
    // Predicated region
    $region18: #{lstm_single_forward.1} parent=1 // pred_check
      %p23 = pneg %p22
    $region19: #{lstm_single_forward.1} parent=1 // pred_check_branch
      %25 = sbr.rel (%p23) target = $region21
    $region20: #{lstm_single_forward.1} parent=1 // pred_region
      %v26 = vld [vmem:[%s1] sm:$0xff]
      %vm27 = vcmask 261120
      %28 = vst.msk [vmem:[#allocation2] sm:$0xff] %vm27, %v26
      %v29 = vld [vmem:[%s2] sm:$0xff]
      %30 = vst.msk [vmem:[#allocation3] sm:$0xff] %vm27, %v29
    $region21: #{lstm_single_forward.1} parent=1 // pred_fallthru
      _
    %v31 = vld [vmem:[%s3] sm:$0xff]
    %v32 = vld [vmem:[%s3 + $0x8] sm:$0xff]
    %v33 = vld [vmem:[%s3 + $0x10] sm:$0xff]
    %v34 = vld [vmem:[%s3 + $0x18] sm:$0xff]
    %v35 = vld [vmem:[#allocation2] sm:$0xff]
    %v36 = vld [vmem:[#allocation3] sm:$0xff]
    %v37 = vld [vmem:[%s0] sm:$0xff]
    %vm38 = vcmask 261120
    %v40 = vsel %vm38, %v35, 0
    %42 = vmatprep.subr.mxu0 0.0
    %43 = vmatpush1.msra.mxu0 %v31
    %44 = vmatprep.subr.mxu0 0.0
    %45 = vmatpush1.msra.mxu0 %v32
    %46 = vmatprep.subr.mxu0 0.0
    %47 = vmatpush1.msra.mxu0 %v33
    %48 = vmatprep.subr.mxu0 0.0
    %49 = vmatpush1.msra.mxu0 %v34
    %50 = vmatprep.subr.mxu0 0.0
    %51 = vmatpush1.msra.mxu0 0.0
    %52 = vmatprep.subr.mxu0 0.0
    %53 = vmatpush1.msra.mxu0 0.0
    %54 = vmatprep.subr.mxu0 0.0
    %55 = vmatpush1.msra.mxu0 0.0
    %56 = vmatprep.subr.mxu0 0.0
    %57 = vmatpush1.msra.mxu0 0.0
    %58 = vmatprep.subr.mxu0 0.0
    %59 = vmatpush1.msra.mxu0 0.0
    %60 = vmatprep.subr.mxu0 0.0
    %61 = vmatpush1.msra.mxu0 0.0
    %62 = vmatprep.subr.mxu0 0.0
    %63 = vmatpush1.msra.mxu0 0.0
    %64 = vmatprep.subr.mxu0 0.0
    %65 = vmatpush1.msra.mxu0 0.0
    %66 = vmatprep.subr.mxu0 0.0
    %67 = vmatpush1.msra.mxu0 0.0
    %68 = vmatprep.subr.mxu0 0.0
    %69 = vmatpush1.msra.mxu0 0.0
    %70 = vmatprep.subr.mxu0 0.0
    %71 = vmatpush1.msra.mxu0 0.0
    %72 = vmatprep.subr.mxu0 0.0
    %73 = vmatpush1.msra.mxu0 0.0
    %74 = vmatprep.subr.mxu0 0.0
    %75 = vmatpush1.msra.mxu0 0.0
    %76 = vmatprep.subr.mxu0 0.0
    %77 = vmatpush1.msra.mxu0 0.0
    %78 = vmatprep.subr.mxu0 0.0
    %79 = vmatpush1.msra.mxu0 0.0
    %80 = vmatprep.subr.mxu0 0.0
    %81 = vmatpush1.msra.mxu0 0.0
    %82 = vmatprep.subr.mxu0 0.0
    %83 = vmatpush1.msra.mxu0 0.0
    %84 = vmatprep.subr.mxu0 0.0
    %85 = vmatpush1.msra.mxu0 0.0
    %86 = vmatprep.subr.mxu0 0.0
    %87 = vmatpush1.msra.mxu0 0.0
    %88 = vmatprep.subr.mxu0 0.0
    %89 = vmatpush1.msra.mxu0 0.0
    %90 = vmatprep.subr.mxu0 0.0
    %91 = vmatpush1.msra.mxu0 0.0
    %92 = vmatprep.subr.mxu0 0.0
    %93 = vmatpush1.msra.mxu0 0.0
    %94 = vmatprep.subr.mxu0 0.0
    %95 = vmatpush1.msra.mxu0 0.0
    %96 = vmatprep.subr.mxu0 0.0
    %97 = vmatpush1.msra.mxu0 0.0
    %98 = vmatprep.subr.mxu0 0.0
    %99 = vmatpush1.msra.mxu0 0.0
    %100 = vmatprep.subr.mxu0 0.0
    %101 = vmatpush1.msra.mxu0 0.0
    %102 = vmatprep.subr.mxu0 0.0
    %103 = vmatpush1.msra.mxu0 0.0
    %104 = vmatprep.subr.mxu0 0.0
    %105 = vmatpush1.msra.mxu0 0.0
    %106 = vmatprep.mubr.f32.mxu0 0.0
    %107 = vmatmul.mubr.f32.gmra.mrb[0].mxu0 %v40
    %v108 = vpop.f32.mrb[0].mxu0
    %v109 = vadd.f32 %v37, %v108
    %v110 = vpop.f32.mrb[0].mxu0
    %111 = vdwg.mxu0
    %v112 = vtanh.pop %v109
    %v113 = vmul.f32 %v112, 0.5
    %v114 = vadd.f32 %v113, 0.5
    %116 = vrot.lane.b32.xlu0 %v112, 32
    %v117 = vpop.permute.xlu0 %116
    %v119 = vmul.f32 %v114, %v117
    %121 = vrot.lane.b32.xlu0 %v36, 64
    %v122 = vpop.permute.xlu0 %121
    %v124 = vmul.f32 %v114, %v122
    %126 = vrot.lane.b32.xlu0 %v124, 96
    %v127 = vpop.permute.xlu0 %126
    %v129 = vadd.f32 %v119, %v127
    %v130 = vtanh.pop %v129
    %132 = vrot.lane.b32.xlu0 %v130, 64
    %v133 = vpop.permute.xlu0 %132
    %v135 = vmul.f32 %v114, %v133
    %s136 = scalar_lea.vmem %s0, 8
    %v137 = vld [vmem:[%s136] sm:$0xff]
    %139 = vrot.lane.b32.xlu0 %v135, 32
    %v140 = vpop.permute.xlu0 %139
    %v141 = vsel %vm38, %v140, 0
    %143 = vmatprep.subr.mxu0 0.0
    %144 = vmatpush1.msra.mxu0 %v31
    %145 = vmatprep.subr.mxu0 0.0
    %146 = vmatpush1.msra.mxu0 %v32
    %147 = vmatprep.subr.mxu0 0.0
    %148 = vmatpush1.msra.mxu0 %v33
    %149 = vmatprep.subr.mxu0 0.0
    %150 = vmatpush1.msra.mxu0 %v34
    %151 = vmatprep.subr.mxu0 0.0
    %152 = vmatpush1.msra.mxu0 0.0
    %153 = vmatprep.subr.mxu0 0.0
    %154 = vmatpush1.msra.mxu0 0.0
    %155 = vmatprep.subr.mxu0 0.0
    %156 = vmatpush1.msra.mxu0 0.0
    %157 = vmatprep.subr.mxu0 0.0
    %158 = vmatpush1.msra.mxu0 0.0
    %159 = vmatprep.subr.mxu0 0.0
    %160 = vmatpush1.msra.mxu0 0.0
    %161 = vmatprep.subr.mxu0 0.0
    %162 = vmatpush1.msra.mxu0 0.0
    %163 = vmatprep.subr.mxu0 0.0
    %164 = vmatpush1.msra.mxu0 0.0
    %165 = vmatprep.subr.mxu0 0.0
    %166 = vmatpush1.msra.mxu0 0.0
    %167 = vmatprep.subr.mxu0 0.0
    %168 = vmatpush1.msra.mxu0 0.0
    %169 = vmatprep.subr.mxu0 0.0
    %170 = vmatpush1.msra.mxu0 0.0
    %171 = vmatprep.subr.mxu0 0.0
    %172 = vmatpush1.msra.mxu0 0.0
    %173 = vmatprep.subr.mxu0 0.0
    %174 = vmatpush1.msra.mxu0 0.0
    %175 = vmatprep.subr.mxu0 0.0
    %176 = vmatpush1.msra.mxu0 0.0
    %177 = vmatprep.subr.mxu0 0.0
    %178 = vmatpush1.msra.mxu0 0.0
    %179 = vmatprep.subr.mxu0 0.0
    %180 = vmatpush1.msra.mxu0 0.0
    %181 = vmatprep.subr.mxu0 0.0
    %182 = vmatpush1.msra.mxu0 0.0
    %183 = vmatprep.subr.mxu0 0.0
    %184 = vmatpush1.msra.mxu0 0.0
    %185 = vmatprep.subr.mxu0 0.0
    %186 = vmatpush1.msra.mxu0 0.0
    %187 = vmatprep.subr.mxu0 0.0
    %188 = vmatpush1.msra.mxu0 0.0
    %189 = vmatprep.subr.mxu0 0.0
    %190 = vmatpush1.msra.mxu0 0.0
    %191 = vmatprep.subr.mxu0 0.0
    %192 = vmatpush1.msra.mxu0 0.0
    %193 = vmatprep.subr.mxu0 0.0
    %194 = vmatpush1.msra.mxu0 0.0
    %195 = vmatprep.subr.mxu0 0.0
    %196 = vmatpush1.msra.mxu0 0.0
    %197 = vmatprep.subr.mxu0 0.0
    %198 = vmatpush1.msra.mxu0 0.0
    %199 = vmatprep.subr.mxu0 0.0
    %200 = vmatpush1.msra.mxu0 0.0
    %201 = vmatprep.subr.mxu0 0.0
    %202 = vmatpush1.msra.mxu0 0.0
    %203 = vmatprep.subr.mxu0 0.0
    %204 = vmatpush1.msra.mxu0 0.0
    %205 = vmatprep.subr.mxu0 0.0
    %206 = vmatpush1.msra.mxu0 0.0
    %207 = vmatprep.mubr.f32.mxu0 0.0
    %208 = vmatmul.mubr.f32.gmra.mrb[0].mxu0 %v141
    %v209 = vpop.f32.mrb[0].mxu0
    %v210 = vadd.f32 %v137, %v209
    %v211 = vpop.f32.mrb[0].mxu0
    %212 = vdwg.mxu0
    %v213 = vtanh.pop %v210
    %v214 = vmul.f32 %v213, 0.5
    %v215 = vadd.f32 %v214, 0.5
    %217 = vrot.lane.b32.xlu0 %v213, 32
    %v218 = vpop.permute.xlu0 %217
    %v220 = vmul.f32 %v215, %v218
    %222 = vrot.lane.b32.xlu0 %v129, 32
    %v223 = vpop.permute.xlu0 %222
    %v225 = vmul.f32 %v215, %v223
    %227 = vrot.lane.b32.xlu0 %v225, 96
    %v228 = vpop.permute.xlu0 %227
    %v230 = vadd.f32 %v220, %v228
    %v231 = vtanh.pop %v230
    %233 = vrot.lane.b32.xlu0 %v231, 64
    %v234 = vpop.permute.xlu0 %233
    %v236 = vmul.f32 %v215, %v234
    %s237 = scalar_lea.vmem %s0, 16
    %v238 = vld [vmem:[%s237] sm:$0xff]
    %240 = vrot.lane.b32.xlu0 %v236, 32
    %v241 = vpop.permute.xlu0 %240
    %v242 = vsel %vm38, %v241, 0
    %244 = vmatprep.subr.mxu0 0.0
    %245 = vmatpush1.msra.mxu0 %v31
    %246 = vmatprep.subr.mxu0 0.0
    %247 = vmatpush1.msra.mxu0 %v32
    %248 = vmatprep.subr.mxu0 0.0
    %249 = vmatpush1.msra.mxu0 %v33
    %250 = vmatprep.subr.mxu0 0.0
    %251 = vmatpush1.msra.mxu0 %v34
    %252 = vmatprep.subr.mxu0 0.0
    %253 = vmatpush1.msra.mxu0 0.0
    %254 = vmatprep.subr.mxu0 0.0
    %255 = vmatpush1.msra.mxu0 0.0
    %256 = vmatprep.subr.mxu0 0.0
    %257 = vmatpush1.msra.mxu0 0.0
    %258 = vmatprep.subr.mxu0 0.0
    %259 = vmatpush1.msra.mxu0 0.0
    %260 = vmatprep.subr.mxu0 0.0
    %261 = vmatpush1.msra.mxu0 0.0
    %262 = vmatprep.subr.mxu0 0.0
    %263 = vmatpush1.msra.mxu0 0.0
    %264 = vmatprep.subr.mxu0 0.0
    %265 = vmatpush1.msra.mxu0 0.0
    %266 = vmatprep.subr.mxu0 0.0
    %267 = vmatpush1.msra.mxu0 0.0
    %268 = vmatprep.subr.mxu0 0.0
    %269 = vmatpush1.msra.mxu0 0.0
    %270 = vmatprep.subr.mxu0 0.0
    %271 = vmatpush1.msra.mxu0 0.0
    %272 = vmatprep.subr.mxu0 0.0
    %273 = vmatpush1.msra.mxu0 0.0
    %274 = vmatprep.subr.mxu0 0.0
    %275 = vmatpush1.msra.mxu0 0.0
    %276 = vmatprep.subr.mxu0 0.0
    %277 = vmatpush1.msra.mxu0 0.0
    %278 = vmatprep.subr.mxu0 0.0
    %279 = vmatpush1.msra.mxu0 0.0
    %280 = vmatprep.subr.mxu0 0.0
    %281 = vmatpush1.msra.mxu0 0.0
    %282 = vmatprep.subr.mxu0 0.0
    %283 = vmatpush1.msra.mxu0 0.0
    %284 = vmatprep.subr.mxu0 0.0
    %285 = vmatpush1.msra.mxu0 0.0
    %286 = vmatprep.subr.mxu0 0.0
    %287 = vmatpush1.msra.mxu0 0.0
    %288 = vmatprep.subr.mxu0 0.0
    %289 = vmatpush1.msra.mxu0 0.0
    %290 = vmatprep.subr.mxu0 0.0
    %291 = vmatpush1.msra.mxu0 0.0
    %292 = vmatprep.subr.mxu0 0.0
    %293 = vmatpush1.msra.mxu0 0.0
    %294 = vmatprep.subr.mxu0 0.0
    %295 = vmatpush1.msra.mxu0 0.0
    %296 = vmatprep.subr.mxu0 0.0
    %297 = vmatpush1.msra.mxu0 0.0
    %298 = vmatprep.subr.mxu0 0.0
    %299 = vmatpush1.msra.mxu0 0.0
    %300 = vmatprep.subr.mxu0 0.0
    %301 = vmatpush1.msra.mxu0 0.0
    %302 = vmatprep.subr.mxu0 0.0
    %303 = vmatpush1.msra.mxu0 0.0
    %304 = vmatprep.subr.mxu0 0.0
    %305 = vmatpush1.msra.mxu0 0.0
    %306 = vmatprep.subr.mxu0 0.0
    %307 = vmatpush1.msra.mxu0 0.0
    %308 = vmatprep.mubr.f32.mxu0 0.0
    %309 = vmatmul.mubr.f32.gmra.mrb[0].mxu0 %v242
    %v310 = vpop.f32.mrb[0].mxu0
    %v311 = vadd.f32 %v238, %v310
    %v312 = vpop.f32.mrb[0].mxu0
    %313 = vdwg.mxu0
    %v314 = vtanh.pop %v311
    %v315 = vmul.f32 %v314, 0.5
    %v316 = vadd.f32 %v315, 0.5
    %318 = vrot.lane.b32.xlu0 %v314, 32
    %v319 = vpop.permute.xlu0 %318
    %v321 = vmul.f32 %v316, %v319
    %323 = vrot.lane.b32.xlu0 %v230, 32
    %v324 = vpop.permute.xlu0 %323
    %v326 = vmul.f32 %v316, %v324
    %328 = vrot.lane.b32.xlu0 %v326, 96
    %v329 = vpop.permute.xlu0 %328
    %v331 = vadd.f32 %v321, %v329
    %v332 = vtanh.pop %v331
    %334 = vrot.lane.b32.xlu0 %v332, 64
    %v335 = vpop.permute.xlu0 %334
    %v337 = vmul.f32 %v316, %v335
    %s338 = scalar_lea.vmem %s0, 24
    %v339 = vld [vmem:[%s338] sm:$0xff]
    %341 = vrot.lane.b32.xlu0 %v337, 32
    %v342 = vpop.permute.xlu0 %341
    %v343 = vsel %vm38, %v342, 0
    %345 = vmatprep.subr.mxu0 0.0
    %346 = vmatpush1.msra.mxu0 %v31
    %347 = vmatprep.subr.mxu0 0.0
    %348 = vmatpush1.msra.mxu0 %v32
    %349 = vmatprep.subr.mxu0 0.0
    %350 = vmatpush1.msra.mxu0 %v33
    %351 = vmatprep.subr.mxu0 0.0
    %352 = vmatpush1.msra.mxu0 %v34
    %353 = vmatprep.subr.mxu0 0.0
    %354 = vmatpush1.msra.mxu0 0.0
    %355 = vmatprep.subr.mxu0 0.0
    %356 = vmatpush1.msra.mxu0 0.0
    %357 = vmatprep.subr.mxu0 0.0
    %358 = vmatpush1.msra.mxu0 0.0
    %359 = vmatprep.subr.mxu0 0.0
    %360 = vmatpush1.msra.mxu0 0.0
    %361 = vmatprep.subr.mxu0 0.0
    %362 = vmatpush1.msra.mxu0 0.0
    %363 = vmatprep.subr.mxu0 0.0
    %364 = vmatpush1.msra.mxu0 0.0
    %365 = vmatprep.subr.mxu0 0.0
    %366 = vmatpush1.msra.mxu0 0.0
    %367 = vmatprep.subr.mxu0 0.0
    %368 = vmatpush1.msra.mxu0 0.0
    %369 = vmatprep.subr.mxu0 0.0
    %370 = vmatpush1.msra.mxu0 0.0
    %371 = vmatprep.subr.mxu0 0.0
    %372 = vmatpush1.msra.mxu0 0.0
    %373 = vmatprep.subr.mxu0 0.0
    %374 = vmatpush1.msra.mxu0 0.0
    %375 = vmatprep.subr.mxu0 0.0
    %376 = vmatpush1.msra.mxu0 0.0
    %377 = vmatprep.subr.mxu0 0.0
    %378 = vmatpush1.msra.mxu0 0.0
    %379 = vmatprep.subr.mxu0 0.0
    %380 = vmatpush1.msra.mxu0 0.0
    %381 = vmatprep.subr.mxu0 0.0
    %382 = vmatpush1.msra.mxu0 0.0
    %383 = vmatprep.subr.mxu0 0.0
    %384 = vmatpush1.msra.mxu0 0.0
    %385 = vmatprep.subr.mxu0 0.0
    %386 = vmatpush1.msra.mxu0 0.0
    %387 = vmatprep.subr.mxu0 0.0
    %388 = vmatpush1.msra.mxu0 0.0
    %389 = vmatprep.subr.mxu0 0.0
    %390 = vmatpush1.msra.mxu0 0.0
    %391 = vmatprep.subr.mxu0 0.0
    %392 = vmatpush1.msra.mxu0 0.0
    %393 = vmatprep.subr.mxu0 0.0
    %394 = vmatpush1.msra.mxu0 0.0
    %395 = vmatprep.subr.mxu0 0.0
    %396 = vmatpush1.msra.mxu0 0.0
    %397 = vmatprep.subr.mxu0 0.0
    %398 = vmatpush1.msra.mxu0 0.0
    %399 = vmatprep.subr.mxu0 0.0
    %400 = vmatpush1.msra.mxu0 0.0
    %401 = vmatprep.subr.mxu0 0.0
    %402 = vmatpush1.msra.mxu0 0.0
    %403 = vmatprep.subr.mxu0 0.0
    %404 = vmatpush1.msra.mxu0 0.0
    %405 = vmatprep.subr.mxu0 0.0
    %406 = vmatpush1.msra.mxu0 0.0
    %407 = vmatprep.subr.mxu0 0.0
    %408 = vmatpush1.msra.mxu0 0.0
    %409 = vmatprep.mubr.f32.mxu0 0.0
    %410 = vmatmul.mubr.f32.gmra.mrb[0].mxu0 %v343
    %v411 = vpop.f32.mrb[0].mxu0
    %v412 = vadd.f32 %v339, %v411
    %v413 = vpop.f32.mrb[0].mxu0
    %414 = vdwg.mxu0
    %v415 = vtanh.pop %v412
    %v416 = vmul.f32 %v415, 0.5
    %v417 = vadd.f32 %v416, 0.5
    %419 = vrot.lane.b32.xlu0 %v415, 32
    %v420 = vpop.permute.xlu0 %419
    %v422 = vmul.f32 %v417, %v420
    %424 = vrot.lane.b32.xlu0 %v331, 32
    %v425 = vpop.permute.xlu0 %424
    %v427 = vmul.f32 %v417, %v425
    %429 = vrot.lane.b32.xlu0 %v427, 96
    %v430 = vpop.permute.xlu0 %429
    %v432 = vadd.f32 %v422, %v430
    %v433 = vtanh.pop %v432
    %435 = vrot.lane.b32.xlu0 %v433, 64
    %v436 = vpop.permute.xlu0 %435
    %v438 = vmul.f32 %v417, %v436
    %440 = vrot.lane.b32.xlu0 %v236, 64
    %v441 = vpop.permute.xlu0 %440
    %443 = vrot.lane.b32.xlu0 %v337, 96
    %v444 = vpop.permute.xlu0 %443
    %v446 = vsel %vm38, %v140, %v441
    %vm447 = vcmask 523264
    %v448 = vsel %vm447, %v446, %v444
    %vm449 = vcmask 785408
    %v450 = vsel %vm449, %v448, %v438
    %451 = vst [vmem:[%s4] sm:$0xff] %v450
    %s452 = scalar_lea.vmem %s0, 32
    %v453 = vld [vmem:[%s452] sm:$0xff]
    %455 = vrot.lane.b32.xlu0 %v438, 32
    %v456 = vpop.permute.xlu0 %455
    %v457 = vsel %vm38, %v456, 0
    %459 = vmatprep.subr.mxu0 0.0
    %460 = vmatpush1.msra.mxu0 %v31
    %461 = vmatprep.subr.mxu0 0.0
    %462 = vmatpush1.msra.mxu0 %v32
    %463 = vmatprep.subr.mxu0 0.0
    %464 = vmatpush1.msra.mxu0 %v33
    %465 = vmatprep.subr.mxu0 0.0
    %466 = vmatpush1.msra.mxu0 %v34
    %467 = vmatprep.subr.mxu0 0.0
    %468 = vmatpush1.msra.mxu0 0.0
    %469 = vmatprep.subr.mxu0 0.0
    %470 = vmatpush1.msra.mxu0 0.0
    %471 = vmatprep.subr.mxu0 0.0
    %472 = vmatpush1.msra.mxu0 0.0
    %473 = vmatprep.subr.mxu0 0.0
    %474 = vmatpush1.msra.mxu0 0.0
    %475 = vmatprep.subr.mxu0 0.0
    %476 = vmatpush1.msra.mxu0 0.0
    %477 = vmatprep.subr.mxu0 0.0
    %478 = vmatpush1.msra.mxu0 0.0
    %479 = vmatprep.subr.mxu0 0.0
    %480 = vmatpush1.msra.mxu0 0.0
    %481 = vmatprep.subr.mxu0 0.0
    %482 = vmatpush1.msra.mxu0 0.0
    %483 = vmatprep.subr.mxu0 0.0
    %484 = vmatpush1.msra.mxu0 0.0
    %485 = vmatprep.subr.mxu0 0.0
    %486 = vmatpush1.msra.mxu0 0.0
    %487 = vmatprep.subr.mxu0 0.0
    %488 = vmatpush1.msra.mxu0 0.0
    %489 = vmatprep.subr.mxu0 0.0
    %490 = vmatpush1.msra.mxu0 0.0
    %491 = vmatprep.subr.mxu0 0.0
    %492 = vmatpush1.msra.mxu0 0.0
    %493 = vmatprep.subr.mxu0 0.0
    %494 = vmatpush1.msra.mxu0 0.0
    %495 = vmatprep.subr.mxu0 0.0
    %496 = vmatpush1.msra.mxu0 0.0
    %497 = vmatprep.subr.mxu0 0.0
    %498 = vmatpush1.msra.mxu0 0.0
    %499 = vmatprep.subr.mxu0 0.0
    %500 = vmatpush1.msra.mxu0 0.0
    %501 = vmatprep.subr.mxu0 0.0
    %502 = vmatpush1.msra.mxu0 0.0
    %503 = vmatprep.subr.mxu0 0.0
    %504 = vmatpush1.msra.mxu0 0.0
    %505 = vmatprep.subr.mxu0 0.0
    %506 = vmatpush1.msra.mxu0 0.0
    %507 = vmatprep.subr.mxu0 0.0
    %508 = vmatpush1.msra.mxu0 0.0
    %509 = vmatprep.subr.mxu0 0.0
    %510 = vmatpush1.msra.mxu0 0.0
    %511 = vmatprep.subr.mxu0 0.0
    %512 = vmatpush1.msra.mxu0 0.0
    %513 = vmatprep.subr.mxu0 0.0
    %514 = vmatpush1.msra.mxu0 0.0
    %515 = vmatprep.subr.mxu0 0.0
    %516 = vmatpush1.msra.mxu0 0.0
    %517 = vmatprep.subr.mxu0 0.0
    %518 = vmatpush1.msra.mxu0 0.0
    %519 = vmatprep.subr.mxu0 0.0
    %520 = vmatpush1.msra.mxu0 0.0
    %521 = vmatprep.subr.mxu0 0.0
    %522 = vmatpush1.msra.mxu0 0.0
    %523 = vmatprep.mubr.f32.mxu0 0.0
    %524 = vmatmul.mubr.f32.gmra.mrb[0].mxu0 %v457
    %v525 = vpop.f32.mrb[0].mxu0
    %v526 = vadd.f32 %v453, %v525
    %v527 = vpop.f32.mrb[0].mxu0
    %528 = vdwg.mxu0
    %v529 = vtanh.pop %v526
    %v530 = vmul.f32 %v529, 0.5
    %v531 = vadd.f32 %v530, 0.5
    %533 = vrot.lane.b32.xlu0 %v529, 32
    %v534 = vpop.permute.xlu0 %533
    %v536 = vmul.f32 %v531, %v534
    %538 = vrot.lane.b32.xlu0 %v432, 32
    %v539 = vpop.permute.xlu0 %538
    %v541 = vmul.f32 %v531, %v539
    %543 = vrot.lane.b32.xlu0 %v541, 96
    %v544 = vpop.permute.xlu0 %543
    %v546 = vadd.f32 %v536, %v544
    %v547 = vtanh.pop %v546
    %549 = vrot.lane.b32.xlu0 %v547, 64
    %v550 = vpop.permute.xlu0 %549
    %v552 = vmul.f32 %v531, %v550
    %s553 = scalar_lea.vmem %s0, 40
    %v554 = vld [vmem:[%s553] sm:$0xff]
    %556 = vrot.lane.b32.xlu0 %v552, 32
    %v557 = vpop.permute.xlu0 %556
    %v558 = vsel %vm38, %v557, 0
    %560 = vmatprep.subr.mxu0 0.0
    %561 = vmatpush1.msra.mxu0 %v31
    %562 = vmatprep.subr.mxu0 0.0
    %563 = vmatpush1.msra.mxu0 %v32
    %564 = vmatprep.subr.mxu0 0.0
    %565 = vmatpush1.msra.mxu0 %v33
    %566 = vmatprep.subr.mxu0 0.0
    %567 = vmatpush1.msra.mxu0 %v34
    %568 = vmatprep.subr.mxu0 0.0
    %569 = vmatpush1.msra.mxu0 0.0
    %570 = vmatprep.subr.mxu0 0.0
    %571 = vmatpush1.msra.mxu0 0.0
    %572 = vmatprep.subr.mxu0 0.0
    %573 = vmatpush1.msra.mxu0 0.0
    %574 = vmatprep.subr.mxu0 0.0
    %575 = vmatpush1.msra.mxu0 0.0
    %576 = vmatprep.subr.mxu0 0.0
    %577 = vmatpush1.msra.mxu0 0.0
    %578 = vmatprep.subr.mxu0 0.0
    %579 = vmatpush1.msra.mxu0 0.0
    %580 = vmatprep.subr.mxu0 0.0
    %581 = vmatpush1.msra.mxu0 0.0
    %582 = vmatprep.subr.mxu0 0.0
    %583 = vmatpush1.msra.mxu0 0.0
    %584 = vmatprep.subr.mxu0 0.0
    %585 = vmatpush1.msra.mxu0 0.0
    %586 = vmatprep.subr.mxu0 0.0
    %587 = vmatpush1.msra.mxu0 0.0
    %588 = vmatprep.subr.mxu0 0.0
    %589 = vmatpush1.msra.mxu0 0.0
    %590 = vmatprep.subr.mxu0 0.0
    %591 = vmatpush1.msra.mxu0 0.0
    %592 = vmatprep.subr.mxu0 0.0
    %593 = vmatpush1.msra.mxu0 0.0
    %594 = vmatprep.subr.mxu0 0.0
    %595 = vmatpush1.msra.mxu0 0.0
    %596 = vmatprep.subr.mxu0 0.0
    %597 = vmatpush1.msra.mxu0 0.0
    %598 = vmatprep.subr.mxu0 0.0
    %599 = vmatpush1.msra.mxu0 0.0
    %600 = vmatprep.subr.mxu0 0.0
    %601 = vmatpush1.msra.mxu0 0.0
    %602 = vmatprep.subr.mxu0 0.0
    %603 = vmatpush1.msra.mxu0 0.0
    %604 = vmatprep.subr.mxu0 0.0
    %605 = vmatpush1.msra.mxu0 0.0
    %606 = vmatprep.subr.mxu0 0.0
    %607 = vmatpush1.msra.mxu0 0.0
    %608 = vmatprep.subr.mxu0 0.0
    %609 = vmatpush1.msra.mxu0 0.0
    %610 = vmatprep.subr.mxu0 0.0
    %611 = vmatpush1.msra.mxu0 0.0
    %612 = vmatprep.subr.mxu0 0.0
    %613 = vmatpush1.msra.mxu0 0.0
    %614 = vmatprep.subr.mxu0 0.0
    %615 = vmatpush1.msra.mxu0 0.0
    %616 = vmatprep.subr.mxu0 0.0
    %617 = vmatpush1.msra.mxu0 0.0
    %618 = vmatprep.subr.mxu0 0.0
    %619 = vmatpush1.msra.mxu0 0.0
    %620 = vmatprep.subr.mxu0 0.0
    %621 = vmatpush1.msra.mxu0 0.0
    %622 = vmatprep.subr.mxu0 0.0
    %623 = vmatpush1.msra.mxu0 0.0
    %624 = vmatprep.mubr.f32.mxu0 0.0
    %625 = vmatmul.mubr.f32.gmra.mrb[0].mxu0 %v558
    %v626 = vpop.f32.mrb[0].mxu0
    %v627 = vadd.f32 %v554, %v626
    %v628 = vpop.f32.mrb[0].mxu0
    %629 = vdwg.mxu0
    %v630 = vtanh.pop %v627
    %v631 = vmul.f32 %v630, 0.5
    %v632 = vadd.f32 %v631, 0.5
    %634 = vrot.lane.b32.xlu0 %v630, 32
    %v635 = vpop.permute.xlu0 %634
    %v637 = vmul.f32 %v632, %v635
    %639 = vrot.lane.b32.xlu0 %v546, 32
    %v640 = vpop.permute.xlu0 %639
    %v642 = vmul.f32 %v632, %v640
    %644 = vrot.lane.b32.xlu0 %v642, 96
    %v645 = vpop.permute.xlu0 %644
    %v647 = vadd.f32 %v637, %v645
    %v648 = vtanh.pop %v647
    %650 = vrot.lane.b32.xlu0 %v648, 64
    %v651 = vpop.permute.xlu0 %650
    %v653 = vmul.f32 %v632, %v651
    %s654 = scalar_lea.vmem %s0, 48
    %v655 = vld [vmem:[%s654] sm:$0xff]
    %657 = vrot.lane.b32.xlu0 %v653, 32
    %v658 = vpop.permute.xlu0 %657
    %v659 = vsel %vm38, %v658, 0
    %661 = vmatprep.subr.mxu0 0.0
    %662 = vmatpush1.msra.mxu0 %v31
    %663 = vmatprep.subr.mxu0 0.0
    %664 = vmatpush1.msra.mxu0 %v32
    %665 = vmatprep.subr.mxu0 0.0
    %666 = vmatpush1.msra.mxu0 %v33
    %667 = vmatprep.subr.mxu0 0.0
    %668 = vmatpush1.msra.mxu0 %v34
    %669 = vmatprep.subr.mxu0 0.0
    %670 = vmatpush1.msra.mxu0 0.0
    %671 = vmatprep.subr.mxu0 0.0
    %672 = vmatpush1.msra.mxu0 0.0
    %673 = vmatprep.subr.mxu0 0.0
    %674 = vmatpush1.msra.mxu0 0.0
    %675 = vmatprep.subr.mxu0 0.0
    %676 = vmatpush1.msra.mxu0 0.0
    %677 = vmatprep.subr.mxu0 0.0
    %678 = vmatpush1.msra.mxu0 0.0
    %679 = vmatprep.subr.mxu0 0.0
    %680 = vmatpush1.msra.mxu0 0.0
    %681 = vmatprep.subr.mxu0 0.0
    %682 = vmatpush1.msra.mxu0 0.0
    %683 = vmatprep.subr.mxu0 0.0
    %684 = vmatpush1.msra.mxu0 0.0
    %685 = vmatprep.subr.mxu0 0.0
    %686 = vmatpush1.msra.mxu0 0.0
    %687 = vmatprep.subr.mxu0 0.0
    %688 = vmatpush1.msra.mxu0 0.0
    %689 = vmatprep.subr.mxu0 0.0
    %690 = vmatpush1.msra.mxu0 0.0
    %691 = vmatprep.subr.mxu0 0.0
    %692 = vmatpush1.msra.mxu0 0.0
    %693 = vmatprep.subr.mxu0 0.0
    %694 = vmatpush1.msra.mxu0 0.0
    %695 = vmatprep.subr.mxu0 0.0
    %696 = vmatpush1.msra.mxu0 0.0
    %697 = vmatprep.subr.mxu0 0.0
    %698 = vmatpush1.msra.mxu0 0.0
    %699 = vmatprep.subr.mxu0 0.0
    %700 = vmatpush1.msra.mxu0 0.0
    %701 = vmatprep.subr.mxu0 0.0
    %702 = vmatpush1.msra.mxu0 0.0
    %703 = vmatprep.subr.mxu0 0.0
    %704 = vmatpush1.msra.mxu0 0.0
    %705 = vmatprep.subr.mxu0 0.0
    %706 = vmatpush1.msra.mxu0 0.0
    %707 = vmatprep.subr.mxu0 0.0
    %708 = vmatpush1.msra.mxu0 0.0
    %709 = vmatprep.subr.mxu0 0.0
    %710 = vmatpush1.msra.mxu0 0.0
    %711 = vmatprep.subr.mxu0 0.0
    %712 = vmatpush1.msra.mxu0 0.0
    %713 = vmatprep.subr.mxu0 0.0
    %714 = vmatpush1.msra.mxu0 0.0
    %715 = vmatprep.subr.mxu0 0.0
    %716 = vmatpush1.msra.mxu0 0.0
    %717 = vmatprep.subr.mxu0 0.0
    %718 = vmatpush1.msra.mxu0 0.0
    %719 = vmatprep.subr.mxu0 0.0
    %720 = vmatpush1.msra.mxu0 0.0
    %721 = vmatprep.subr.mxu0 0.0
    %722 = vmatpush1.msra.mxu0 0.0
    %723 = vmatprep.subr.mxu0 0.0
    %724 = vmatpush1.msra.mxu0 0.0
    %725 = vmatprep.mubr.f32.mxu0 0.0
    %726 = vmatmul.mubr.f32.gmra.mrb[0].mxu0 %v659
    %v727 = vpop.f32.mrb[0].mxu0
    %v728 = vadd.f32 %v655, %v727
    %v729 = vpop.f32.mrb[0].mxu0
    %730 = vdwg.mxu0
    %v731 = vtanh.pop %v728
    %v732 = vmul.f32 %v731, 0.5
    %v733 = vadd.f32 %v732, 0.5
    %735 = vrot.lane.b32.xlu0 %v731, 32
    %v736 = vpop.permute.xlu0 %735
    %v738 = vmul.f32 %v733, %v736
    %740 = vrot.lane.b32.xlu0 %v647, 32
    %v741 = vpop.permute.xlu0 %740
    %v743 = vmul.f32 %v733, %v741
    %745 = vrot.lane.b32.xlu0 %v743, 96
    %v746 = vpop.permute.xlu0 %745
    %v748 = vadd.f32 %v738, %v746
    %v749 = vtanh.pop %v748
    %751 = vrot.lane.b32.xlu0 %v749, 64
    %v752 = vpop.permute.xlu0 %751
    %v754 = vmul.f32 %v733, %v752
    %s755 = scalar_lea.vmem %s0, 56
    %v756 = vld [vmem:[%s755] sm:$0xff]
    %758 = vrot.lane.b32.xlu0 %v754, 32
    %v759 = vpop.permute.xlu0 %758
    %v760 = vsel %vm38, %v759, 0
    %762 = vmatprep.subr.mxu0 0.0
    %763 = vmatpush1.msra.mxu0 %v31
    %764 = vmatprep.subr.mxu0 0.0
    %765 = vmatpush1.msra.mxu0 %v32
    %766 = vmatprep.subr.mxu0 0.0
    %767 = vmatpush1.msra.mxu0 %v33
    %768 = vmatprep.subr.mxu0 0.0
    %769 = vmatpush1.msra.mxu0 %v34
    %770 = vmatprep.subr.mxu0 0.0
    %771 = vmatpush1.msra.mxu0 0.0
    %772 = vmatprep.subr.mxu0 0.0
    %773 = vmatpush1.msra.mxu0 0.0
    %774 = vmatprep.subr.mxu0 0.0
    %775 = vmatpush1.msra.mxu0 0.0
    %776 = vmatprep.subr.mxu0 0.0
    %777 = vmatpush1.msra.mxu0 0.0
    %778 = vmatprep.subr.mxu0 0.0
    %779 = vmatpush1.msra.mxu0 0.0
    %780 = vmatprep.subr.mxu0 0.0
    %781 = vmatpush1.msra.mxu0 0.0
    %782 = vmatprep.subr.mxu0 0.0
    %783 = vmatpush1.msra.mxu0 0.0
    %784 = vmatprep.subr.mxu0 0.0
    %785 = vmatpush1.msra.mxu0 0.0
    %786 = vmatprep.subr.mxu0 0.0
    %787 = vmatpush1.msra.mxu0 0.0
    %788 = vmatprep.subr.mxu0 0.0
    %789 = vmatpush1.msra.mxu0 0.0
    %790 = vmatprep.subr.mxu0 0.0
    %791 = vmatpush1.msra.mxu0 0.0
    %792 = vmatprep.subr.mxu0 0.0
    %793 = vmatpush1.msra.mxu0 0.0
    %794 = vmatprep.subr.mxu0 0.0
    %795 = vmatpush1.msra.mxu0 0.0
    %796 = vmatprep.subr.mxu0 0.0
    %797 = vmatpush1.msra.mxu0 0.0
    %798 = vmatprep.subr.mxu0 0.0
    %799 = vmatpush1.msra.mxu0 0.0
    %800 = vmatprep.subr.mxu0 0.0
    %801 = vmatpush1.msra.mxu0 0.0
    %802 = vmatprep.subr.mxu0 0.0
    %803 = vmatpush1.msra.mxu0 0.0
    %804 = vmatprep.subr.mxu0 0.0
    %805 = vmatpush1.msra.mxu0 0.0
    %806 = vmatprep.subr.mxu0 0.0
    %807 = vmatpush1.msra.mxu0 0.0
    %808 = vmatprep.subr.mxu0 0.0
    %809 = vmatpush1.msra.mxu0 0.0
    %810 = vmatprep.subr.mxu0 0.0
    %811 = vmatpush1.msra.mxu0 0.0
    %812 = vmatprep.subr.mxu0 0.0
    %813 = vmatpush1.msra.mxu0 0.0
    %814 = vmatprep.subr.mxu0 0.0
    %815 = vmatpush1.msra.mxu0 0.0
    %816 = vmatprep.subr.mxu0 0.0
    %817 = vmatpush1.msra.mxu0 0.0
    %818 = vmatprep.subr.mxu0 0.0
    %819 = vmatpush1.msra.mxu0 0.0
    %820 = vmatprep.subr.mxu0 0.0
    %821 = vmatpush1.msra.mxu0 0.0
    %822 = vmatprep.subr.mxu0 0.0
    %823 = vmatpush1.msra.mxu0 0.0
    %824 = vmatprep.subr.mxu0 0.0
    %825 = vmatpush1.msra.mxu0 0.0
    %826 = vmatprep.mubr.f32.mxu0 0.0
    %827 = vmatmul.mubr.f32.gmra.mrb[0].mxu0 %v760
    %v828 = vpop.f32.mrb[0].mxu0
    %v829 = vadd.f32 %v756, %v828
    %v830 = vpop.f32.mrb[0].mxu0
    %831 = vdwg.mxu0
    %v832 = vtanh.pop %v829
    %v833 = vmul.f32 %v832, 0.5
    %v834 = vadd.f32 %v833, 0.5
    %836 = vrot.lane.b32.xlu0 %v832, 32
    %v837 = vpop.permute.xlu0 %836
    %v839 = vmul.f32 %v834, %v837
    %841 = vrot.lane.b32.xlu0 %v748, 32
    %v842 = vpop.permute.xlu0 %841
    %v844 = vmul.f32 %v834, %v842
    %846 = vrot.lane.b32.xlu0 %v844, 96
    %v847 = vpop.permute.xlu0 %846
    %v849 = vadd.f32 %v839, %v847
    %v850 = vtanh.pop %v849
    %852 = vrot.lane.b32.xlu0 %v850, 64
    %v853 = vpop.permute.xlu0 %852
    %v855 = vmul.f32 %v834, %v853
    %857 = vrot.lane.b32.xlu0 %v653, 64
    %v858 = vpop.permute.xlu0 %857
    %860 = vrot.lane.b32.xlu0 %v754, 96
    %v861 = vpop.permute.xlu0 %860
    %v863 = vsel %vm38, %v557, %v858
    %v864 = vsel %vm447, %v863, %v861
    %v865 = vsel %vm449, %v864, %v855
    %s866 = scalar_lea.vmem %s4, 8
    %867 = vst [vmem:[%s866] sm:$0xff] %v865
    %869 = vrot.lane.b32.xlu0 %v855, 32
    %v870 = vpop.permute.xlu0 %869
    %872 = vst.msk [vmem:[#allocation2] sm:$0xff] %vm38, %v870
    %874 = vrot.lane.b32.xlu0 %v849, 96
    %v875 = vpop.permute.xlu0 %874
    %877 = vst.msk [vmem:[#allocation3] sm:$0xff] %vm38, %v875
    %878 = vst.msk [vmem:[#allocation4] sm:$0xff] %vm38, %v870
    %879 = vst.msk [vmem:[#allocation6] sm:$0xff] %vm38, %v875
    // Predicated region
    $region22: #{lstm_single_forward.1} parent=1 // pred_check
      _
    $region23: #{lstm_single_forward.1} parent=1 // pred_check_branch
      %881 = sbr.rel (0) target = $region25
    $region24: #{lstm_single_forward.1} parent=1 // pred_region
      _
    $region25: #{lstm_single_forward.1} parent=1 // pred_fallthru
      _
    // Predicated region
    $region26: #{lstm_single_forward.1} parent=1 // pred_check
      _
    $region27: #{lstm_single_forward.1} parent=1 // pred_check_branch
      %883 = sbr.rel (0) target = $region29
    $region28: #{lstm_single_forward.1} parent=1 // pred_region
      %s885 = ssub.s32 128, 128
      %886 = vsyncadd [#allocation5], %s885
      %s888 = sshll.u32 [#allocation4], 4
      %s889 = int_to_ptr.vmem [resolvable:$true] %s888
      %891 = dma.vmem_to_hbm [thread:$0]  %s889, 128, %s5, [#allocation5]
    $region29: #{lstm_single_forward.1} parent=1 // pred_fallthru
      _
    // Predicated region
    $region30: #{lstm_single_forward.1} parent=1 // pred_check
      _
    $region31: #{lstm_single_forward.1} parent=1 // pred_check_branch
      %893 = sbr.rel (0) target = $region33
    $region32: #{lstm_single_forward.1} parent=1 // pred_region
      %s895 = ssub.s32 128, 128
      %896 = vsyncadd [#allocation7], %s895
      %s898 = sshll.u32 [#allocation6], 4
      %s899 = int_to_ptr.vmem [resolvable:$true] %s898
      %901 = dma.vmem_to_hbm [thread:$0]  %s899, 128, %s6, [#allocation7]
    $region33: #{lstm_single_forward.1} parent=1 // pred_fallthru
      _
    // Predicated region
    $region34: #{lstm_single_forward.1} parent=1 // pred_check
      _
    $region35: #{lstm_single_forward.1} parent=1 // pred_check_branch
      %903 = sbr.rel (0) target = $region37
    $region36: #{lstm_single_forward.1} parent=1 // pred_region
      _
    $region37: #{lstm_single_forward.1} parent=1 // pred_fallthru
      _
    // Predicated region
    $region38: #{lstm_single_forward.1} parent=1 // pred_check
      _
    $region39: #{lstm_single_forward.1} parent=1 // pred_check_branch
      %905 = sbr.rel (0) target = $region41
    $region40: #{lstm_single_forward.1} parent=1 // pred_region
      %906 = dma.done [#allocation5], 128
    $region41: #{lstm_single_forward.1} parent=1 // pred_fallthru
      _
    // Predicated region
    $region42: #{lstm_single_forward.1} parent=1 // pred_check
      _
    $region43: #{lstm_single_forward.1} parent=1 // pred_check_branch
      %908 = sbr.rel (0) target = $region45
    $region44: #{lstm_single_forward.1} parent=1 // pred_region
      %909 = dma.done [#allocation7], 128
    $region45: #{lstm_single_forward.1} parent=1 // pred_fallthru
      _
    %910 = vsyncpa [#allocation5], 1
    %911 = vsyncpa [#allocation7], 1

</llo_original>
